<compile_context>
chip_gen: v5e
topology: v5e:2x2
jax: 0.10.0
libtpu: 0.0.40
codegen_flags: <defaults>
</compile_context>

<pallas_src>
import math

import jax
import jax.numpy as jnp
from jax.experimental import pallas as pl
from jax.experimental.pallas import tpu as pltpu

_BN_EPS = 1e-5


# ---------------------------------------------------------------------------
# Layer plan: flatten (encoder + decoder) into
#   (kind, weight_index, vector_row_start, dout) descriptors.
# ---------------------------------------------------------------------------
def _build_layer_plan(encoder_dim):
    dims = list(encoder_dim)
    dec = list(reversed(dims))
    D = len(dims) - 1
    layers = []
    w_idx, v_row = 0, 0
    # encoder: Linear(+BN+ReLU) for hidden layers, final Linear(+bias)+Softmax
    for i in range(D):
        dout = dims[i + 1]
        if i < D - 1:
            layers.append(("bn_relu", w_idx, v_row, dout))
            w_idx += 1
            v_row += 2                      # gamma, beta
        else:
            layers.append(("softmax", w_idx, v_row, dout))
            w_idx += 1
            v_row += 1                      # bias
    # decoder: every layer is Linear+BN+ReLU
    for i in range(D):
        dout = dec[i + 1]
        layers.append(("bn_relu", w_idx, v_row, dout))
        w_idx += 1
        v_row += 2
    return layers, w_idx, v_row, D


# ---------------------------------------------------------------------------
# Single fused kernel: whole autoencoder forward in VMEM.
# ---------------------------------------------------------------------------
def _make_fused_kernel(layers, n_enc_layers, n_weights):
    def kernel(x_ref, vec_ref, *refs):
        w_refs = refs[:n_weights]
        out_ref = refs[n_weights]

        vecs = vec_ref[...]                  # (n_rows, max_dout) f32, loaded once
        h = x_ref[...]                       # (num, feat) f32
        latent = None
        for li, (kind, wi, vr, dout) in enumerate(layers):
            w = w_refs[wi][...]              # (din, dout) bf16
            y = jnp.dot(h.astype(jnp.bfloat16), w,
                        preferred_element_type=jnp.float32)
            if kind == "bn_relu":
                gamma = vecs[vr:vr + 1, :dout]
                beta = vecs[vr + 1:vr + 2, :dout]
                # Training-mode BatchNorm1d: batch mean, biased variance.
                # Centered two-pass variance for numerical robustness.
                mean = jnp.mean(y, axis=0, keepdims=True)
                c = y - mean
                var = jnp.mean(c * c, axis=0, keepdims=True)
                scale = gamma * jax.lax.rsqrt(var + _BN_EPS)
                h = jnp.maximum(c * scale + beta, 0.0)            # ReLU
            else:  # final encoder layer: Linear(+bias) -> Softmax(dim=1)
                b = vecs[vr:vr + 1, :dout]
                y = y + b
                m = jnp.max(y, axis=1, keepdims=True)
                e = jnp.exp(y - m)
                h = e / jnp.sum(e, axis=1, keepdims=True)         # exact division
            if li == n_enc_layers - 1:
                latent = h                   # encoder output (held in registers)
        # Single lane-contiguous store of both outputs: [x_hat | latent].
        out_ref[...] = jnp.concatenate([h, latent], axis=1)

    return kernel


def _padded_vmem_bytes(shape, dtype):
    """(8,128)/(16,128)-tile-padded VMEM footprint of a 2-D array."""
    if dtype == jnp.bfloat16:
        sub, itemsize = 16, 2
    else:
        sub, itemsize = 8, 4
    r, c = shape[0], shape[-1]
    return (math.ceil(r / sub) * sub) * (math.ceil(c / 128) * 128) * itemsize


# ---------------------------------------------------------------------------
# Wrapper: one pallas_call, no grid, everything resident in VMEM.
# ---------------------------------------------------------------------------
def make_autoencoder_forward(encoder_dim, num):
    dims = list(encoder_dim)
    dec = list(reversed(dims))
    D = len(dims) - 1
    feat, latent_dim = dims[0], dims[-1]
    max_dout = max(dims[1:] + dec[1:])

    layers, n_weights, n_vec_rows, _ = _build_layer_plan(encoder_dim)
    kernel = _make_fused_kernel(layers, D, n_weights)

    pairs = list(zip(dims[:-1], dims[1:])) + list(zip(dec[:-1], dec[1:]))
    flops = 2 * num * sum(di * do for di, do in pairs)
    n_bn = 2 * D - 1
    transcendentals = num * latent_dim + n_bn * max_dout          # exp + rsqrt
    bytes_accessed = (num * feat * 4
                      + sum(di * do * 2 for di, do in pairs)      # bf16 weights
                      + n_vec_rows * max_dout * 4
                      + num * (feat + latent_dim) * 4)

    # Resident VMEM estimate: 2x for input double-buffering, plus output and
    # activation/intermediate headroom.  Must fit v7x's 64 MiB physical VMEM.
    resident = (2 * (_padded_vmem_bytes((num, feat), jnp.float32)
                     + _padded_vmem_bytes((n_vec_rows, max_dout), jnp.float32)
                     + sum(_padded_vmem_bytes((di, do), jnp.bfloat16)
                           for di, do in pairs))
                + 2 * _padded_vmem_bytes((num, feat + latent_dim), jnp.float32)
                + (2 * D + 2) * _padded_vmem_bytes((num, max_dout), jnp.float32))
    assert resident < 48 * 1024 * 1024, (
        f"resident VMEM estimate {resident} B exceeds v7x headroom; "
        "switch to a batch grid + two-pass BatchNorm")
    vmem_limit = int(min(max(4 * resident, 8 << 20), 48 << 20))

    vmem = pl.BlockSpec(memory_space=pltpu.MemorySpace.VMEM)

    def forward(vec_slab, weights, x):
        out = pl.pallas_call(
            kernel,
            out_shape=jax.ShapeDtypeStruct((num, feat + latent_dim), jnp.float32),
            in_specs=[vmem] * (2 + n_weights),
            out_specs=vmem,
            compiler_params=pltpu.CompilerParams(vmem_limit_bytes=vmem_limit),
            cost_estimate=pl.CostEstimate(
                flops=flops,
                transcendentals=transcendentals,
                bytes_accessed=bytes_accessed),
        )(x, vec_slab, *weights)
        return out[:, :feat], out[:, feat:]

    return jax.jit(forward)


# ---------------------------------------------------------------------------
# Parameter construction (deterministic, PyTorch-style init).
#   weights: tuple of bf16 [din, dout] matrices (pre-transposed vs nn.Linear)
#   vec_slab: f32 [n_rows, max_dout] slab of (bias | gamma | beta) rows
# BN-layer Linear biases are omitted (cancelled by the BN mean subtraction).
# ---------------------------------------------------------------------------
def init_autoencoder_params(key, encoder_dim):
    dims = list(encoder_dim)
    dec = list(reversed(dims))
    D = len(dims) - 1
    max_dout = max(dims[1:] + dec[1:])
    keys = jax.random.split(key, 2 * D)

    def linear_w(k, din, dout):
        bound = 1.0 / math.sqrt(din)
        return jax.random.uniform(k, (din, dout), jnp.float32,
                                  -bound, bound).astype(jnp.bfloat16)

    def pad_row(row):
        return jnp.pad(row, (0, max_dout - row.shape[0]))

    weights, vec_rows = [], []
    for i in range(D):
        din, dout = dims[i], dims[i + 1]
        kw, kb = jax.random.split(keys[i])
        weights.append(linear_w(kw, din, dout))
        if i < D - 1:
            vec_rows.append(pad_row(jnp.ones((dout,), jnp.float32)))    # gamma
            vec_rows.append(pad_row(jnp.zeros((dout,), jnp.float32)))   # beta
        else:
            bound = 1.0 / math.sqrt(din)
            b = jax.random.uniform(kb, (dout,), jnp.float32, -bound, bound)
            vec_rows.append(pad_row(b))                                 # bias
    for i in range(D):
        din, dout = dec[i], dec[i + 1]
        kw, _ = jax.random.split(keys[D + i])
        weights.append(linear_w(kw, din, dout))
        vec_rows.append(pad_row(jnp.ones((dout,), jnp.float32)))        # gamma
        vec_rows.append(pad_row(jnp.zeros((dout,), jnp.float32)))       # beta
    return jnp.stack(vec_rows, axis=0), tuple(weights)


# ---------------------------------------------------------------------------
# Pure-JAX reference (same math / dtypes) for a correctness sanity check.
# ---------------------------------------------------------------------------
def autoencoder_reference(encoder_dim, vec_slab, weights, x):
    layers, _, _, D = _build_layer_plan(encoder_dim)
    h = x
    latent = None
    for li, (kind, wi, vr, dout) in enumerate(layers):
        y = jnp.dot(h.astype(jnp.bfloat16), weights[wi],
                    preferred_element_type=jnp.float32)
        if kind == "bn_relu":
            gamma = vec_slab[vr:vr + 1, :dout]
            beta = vec_slab[vr + 1:vr + 2, :dout]
            mean = jnp.mean(y, axis=0, keepdims=True)
            c = y - mean
            var = jnp.mean(c * c, axis=0, keepdims=True)
            h = jnp.maximum(c * (gamma * jax.lax.rsqrt(var + _BN_EPS)) + beta, 0.0)
        else:
            y = y + vec_slab[vr:vr + 1, :dout]
            h = jax.nn.softmax(y, axis=1)
        if li == D - 1:
            latent = h
    return h, latent


if __name__ == "__main__":
    encoder_dim = [16, 32, 8]   # feat=16, hidden=32, latent=8
    num = 8                     # whole batch resident in one block -> BN-correct

    key = jax.random.PRNGKey(0)
    k_params, k_x = jax.random.split(key)
    vec_slab, weights = init_autoencoder_params(k_params, encoder_dim)
    x = jax.random.normal(k_x, (num, encoder_dim[0]), jnp.float32)

    forward = make_autoencoder_forward(encoder_dim, num)
    x_hat, latent = forward(vec_slab, weights, x)
    jax.block_until_ready((x_hat, latent))

    assert x_hat.shape == (num, encoder_dim[0])
    assert latent.shape == (num, encoder_dim[-1])
    assert bool(jnp.all(jnp.isfinite(x_hat))) and bool(jnp.all(jnp.isfinite(latent)))
    # Softmax rows must sum to ~1 (exact division now -> tight tolerance).
    assert bool(jnp.allclose(jnp.sum(latent, axis=1), 1.0, atol=1e-4))
    # Pure-JAX reference check.
    x_hat_ref, latent_ref = autoencoder_reference(encoder_dim, vec_slab, weights, x)
    assert bool(jnp.allclose(latent, latent_ref, atol=5e-3, rtol=5e-3))
    assert bool(jnp.allclose(x_hat, x_hat_ref, atol=5e-3, rtol=5e-3))
    print("KERNEL_OK")
</pallas_src>

<mosaic_0001>
module attributes {stable_mosaic.version = 11 : i64} {
  func.func @kernel(%arg0: memref<8x16xf32, #tpu.memory_space<vmem>>, %arg1: memref<7x32xf32, #tpu.memory_space<vmem>>, %arg2: memref<16x32xbf16, #tpu.memory_space<vmem>>, %arg3: memref<32x8xbf16, #tpu.memory_space<vmem>>, %arg4: memref<8x32xbf16, #tpu.memory_space<vmem>>, %arg5: memref<32x16xbf16, #tpu.memory_space<vmem>>, %arg6: memref<8x24xf32, #tpu.memory_space<vmem>>) attributes {dimension_semantics = [], scalar_prefetch = 0 : i64, scratch_operands = 0 : i64, tpu.core_type = #tpu.core_type<tc>} {
    %c0 = arith.constant 0 : index
    %c0_0 = arith.constant 0 : index
    %0 = vector.load %arg1[%c0, %c0_0] : memref<7x32xf32, #tpu.memory_space<vmem>>, vector<7x32xf32>
    %c0_1 = arith.constant 0 : index
    %c0_2 = arith.constant 0 : index
    %1 = vector.load %arg0[%c0_1, %c0_2] : memref<8x16xf32, #tpu.memory_space<vmem>>, vector<8x16xf32>
    %c0_3 = arith.constant 0 : index
    %c0_4 = arith.constant 0 : index
    %2 = vector.load %arg2[%c0_3, %c0_4] : memref<16x32xbf16, #tpu.memory_space<vmem>>, vector<16x32xbf16>
    %3 = arith.truncf %1 : vector<8x16xf32> to vector<8x16xbf16>
    %cst = arith.constant dense<0.000000e+00> : vector<8x32xf32>
    %4 = tpu.matmul %3, %2, %cst {dimension_numbers = #tpu.dot_dimension_numbers<[1], [0], [0], [1], [0, 0, 1, 1], [], []>} : vector<8x16xbf16>, vector<16x32xbf16>, vector<8x32xf32> -> vector<8x32xf32>
    %5 = vector.extract_strided_slice %0 {offsets = [0, 0], sizes = [1, 32], strides = [1, 1]} : vector<7x32xf32> to vector<1x32xf32>
    %6 = vector.extract_strided_slice %0 {offsets = [1, 0], sizes = [1, 32], strides = [1, 1]} : vector<7x32xf32> to vector<1x32xf32>
    %cst_5 = arith.constant dense<0.000000e+00> : vector<32xf32>
    %7 = vector.multi_reduction <add>, %4, %cst_5 [0] : vector<8x32xf32> to vector<32xf32>
    %8 = vector.shape_cast %7 : vector<32xf32> to vector<1x32xf32>
    %cst_6 = arith.constant 8.000000e+00 : f32
    %9 = vector.broadcast %cst_6 : f32 to vector<1x32xf32>
    %10 = arith.divf %8, %9 : vector<1x32xf32>
    %11 = vector.broadcast %10 : vector<1x32xf32> to vector<8x32xf32>
    %12 = arith.subf %4, %11 : vector<8x32xf32>
    %13 = arith.mulf %12, %12 : vector<8x32xf32>
    %cst_7 = arith.constant dense<0.000000e+00> : vector<32xf32>
    %14 = vector.multi_reduction <add>, %13, %cst_7 [0] : vector<8x32xf32> to vector<32xf32>
    %15 = vector.shape_cast %14 : vector<32xf32> to vector<1x32xf32>
    %cst_8 = arith.constant 8.000000e+00 : f32
    %16 = vector.broadcast %cst_8 : f32 to vector<1x32xf32>
    %17 = arith.divf %15, %16 : vector<1x32xf32>
    %cst_9 = arith.constant 9.99999974E-6 : f32
    %18 = vector.broadcast %cst_9 : f32 to vector<1x32xf32>
    %19 = arith.addf %17, %18 : vector<1x32xf32>
    %20 = math.rsqrt %19 : vector<1x32xf32>
    %21 = arith.mulf %5, %20 : vector<1x32xf32>
    %22 = vector.broadcast %21 : vector<1x32xf32> to vector<8x32xf32>
    %23 = arith.mulf %12, %22 : vector<8x32xf32>
    %24 = vector.broadcast %6 : vector<1x32xf32> to vector<8x32xf32>
    %25 = arith.addf %23, %24 : vector<8x32xf32>
    %cst_10 = arith.constant 0.000000e+00 : f32
    %26 = vector.broadcast %cst_10 : f32 to vector<8x32xf32>
    %27 = arith.maximumf %25, %26 : vector<8x32xf32>
    %c0_11 = arith.constant 0 : index
    %c0_12 = arith.constant 0 : index
    %28 = vector.load %arg3[%c0_11, %c0_12] : memref<32x8xbf16, #tpu.memory_space<vmem>>, vector<32x8xbf16>
    %29 = arith.truncf %27 : vector<8x32xf32> to vector<8x32xbf16>
    %cst_13 = arith.constant dense<0.000000e+00> : vector<8x8xf32>
    %30 = tpu.matmul %29, %28, %cst_13 {dimension_numbers = #tpu.dot_dimension_numbers<[1], [0], [0], [1], [0, 0, 1, 1], [], []>} : vector<8x32xbf16>, vector<32x8xbf16>, vector<8x8xf32> -> vector<8x8xf32>
    %31 = vector.extract_strided_slice %0 {offsets = [2, 0], sizes = [1, 8], strides = [1, 1]} : vector<7x32xf32> to vector<1x8xf32>
    %32 = vector.broadcast %31 : vector<1x8xf32> to vector<8x8xf32>
    %33 = arith.addf %30, %32 : vector<8x8xf32>
    %cst_14 = arith.constant dense<0xFF800000> : vector<8xf32>
    %34 = vector.multi_reduction <maximumf>, %33, %cst_14 [1] : vector<8x8xf32> to vector<8xf32>
    %35 = vector.shape_cast %34 : vector<8xf32> to vector<8x1xf32>
    %36 = vector.broadcast %35 : vector<8x1xf32> to vector<8x8xf32>
    %37 = arith.subf %33, %36 : vector<8x8xf32>
    %38 = math.exp %37 : vector<8x8xf32>
    %cst_15 = arith.constant dense<0.000000e+00> : vector<8xf32>
    %39 = vector.multi_reduction <add>, %38, %cst_15 [1] : vector<8x8xf32> to vector<8xf32>
    %40 = vector.shape_cast %39 : vector<8xf32> to vector<8x1xf32>
    %41 = vector.broadcast %40 : vector<8x1xf32> to vector<8x8xf32>
    %42 = arith.divf %38, %41 : vector<8x8xf32>
    %c0_16 = arith.constant 0 : index
    %c0_17 = arith.constant 0 : index
    %43 = vector.load %arg4[%c0_16, %c0_17] : memref<8x32xbf16, #tpu.memory_space<vmem>>, vector<8x32xbf16>
    %44 = arith.truncf %42 : vector<8x8xf32> to vector<8x8xbf16>
    %cst_18 = arith.constant dense<0.000000e+00> : vector<8x32xf32>
    %45 = tpu.matmul %44, %43, %cst_18 {dimension_numbers = #tpu.dot_dimension_numbers<[1], [0], [0], [1], [0, 0, 1, 1], [], []>} : vector<8x8xbf16>, vector<8x32xbf16>, vector<8x32xf32> -> vector<8x32xf32>
    %46 = vector.extract_strided_slice %0 {offsets = [3, 0], sizes = [1, 32], strides = [1, 1]} : vector<7x32xf32> to vector<1x32xf32>
    %47 = vector.extract_strided_slice %0 {offsets = [4, 0], sizes = [1, 32], strides = [1, 1]} : vector<7x32xf32> to vector<1x32xf32>
    %cst_19 = arith.constant dense<0.000000e+00> : vector<32xf32>
    %48 = vector.multi_reduction <add>, %45, %cst_19 [0] : vector<8x32xf32> to vector<32xf32>
    %49 = vector.shape_cast %48 : vector<32xf32> to vector<1x32xf32>
    %cst_20 = arith.constant 8.000000e+00 : f32
    %50 = vector.broadcast %cst_20 : f32 to vector<1x32xf32>
    %51 = arith.divf %49, %50 : vector<1x32xf32>
    %52 = vector.broadcast %51 : vector<1x32xf32> to vector<8x32xf32>
    %53 = arith.subf %45, %52 : vector<8x32xf32>
    %54 = arith.mulf %53, %53 : vector<8x32xf32>
    %cst_21 = arith.constant dense<0.000000e+00> : vector<32xf32>
    %55 = vector.multi_reduction <add>, %54, %cst_21 [0] : vector<8x32xf32> to vector<32xf32>
    %56 = vector.shape_cast %55 : vector<32xf32> to vector<1x32xf32>
    %cst_22 = arith.constant 8.000000e+00 : f32
    %57 = vector.broadcast %cst_22 : f32 to vector<1x32xf32>
    %58 = arith.divf %56, %57 : vector<1x32xf32>
    %cst_23 = arith.constant 9.99999974E-6 : f32
    %59 = vector.broadcast %cst_23 : f32 to vector<1x32xf32>
    %60 = arith.addf %58, %59 : vector<1x32xf32>
    %61 = math.rsqrt %60 : vector<1x32xf32>
    %62 = arith.mulf %46, %61 : vector<1x32xf32>
    %63 = vector.broadcast %62 : vector<1x32xf32> to vector<8x32xf32>
    %64 = arith.mulf %53, %63 : vector<8x32xf32>
    %65 = vector.broadcast %47 : vector<1x32xf32> to vector<8x32xf32>
    %66 = arith.addf %64, %65 : vector<8x32xf32>
    %cst_24 = arith.constant 0.000000e+00 : f32
    %67 = vector.broadcast %cst_24 : f32 to vector<8x32xf32>
    %68 = arith.maximumf %66, %67 : vector<8x32xf32>
    %c0_25 = arith.constant 0 : index
    %c0_26 = arith.constant 0 : index
    %69 = vector.load %arg5[%c0_25, %c0_26] : memref<32x16xbf16, #tpu.memory_space<vmem>>, vector<32x16xbf16>
    %70 = arith.truncf %68 : vector<8x32xf32> to vector<8x32xbf16>
    %cst_27 = arith.constant dense<0.000000e+00> : vector<8x16xf32>
    %71 = tpu.matmul %70, %69, %cst_27 {dimension_numbers = #tpu.dot_dimension_numbers<[1], [0], [0], [1], [0, 0, 1, 1], [], []>} : vector<8x32xbf16>, vector<32x16xbf16>, vector<8x16xf32> -> vector<8x16xf32>
    %72 = vector.extract_strided_slice %0 {offsets = [5, 0], sizes = [1, 16], strides = [1, 1]} : vector<7x32xf32> to vector<1x16xf32>
    %73 = vector.extract_strided_slice %0 {offsets = [6, 0], sizes = [1, 16], strides = [1, 1]} : vector<7x32xf32> to vector<1x16xf32>
    %cst_28 = arith.constant dense<0.000000e+00> : vector<16xf32>
    %74 = vector.multi_reduction <add>, %71, %cst_28 [0] : vector<8x16xf32> to vector<16xf32>
    %75 = vector.shape_cast %74 : vector<16xf32> to vector<1x16xf32>
    %cst_29 = arith.constant 8.000000e+00 : f32
    %76 = vector.broadcast %cst_29 : f32 to vector<1x16xf32>
    %77 = arith.divf %75, %76 : vector<1x16xf32>
    %78 = vector.broadcast %77 : vector<1x16xf32> to vector<8x16xf32>
    %79 = arith.subf %71, %78 : vector<8x16xf32>
    %80 = arith.mulf %79, %79 : vector<8x16xf32>
    %cst_30 = arith.constant dense<0.000000e+00> : vector<16xf32>
    %81 = vector.multi_reduction <add>, %80, %cst_30 [0] : vector<8x16xf32> to vector<16xf32>
    %82 = vector.shape_cast %81 : vector<16xf32> to vector<1x16xf32>
    %cst_31 = arith.constant 8.000000e+00 : f32
    %83 = vector.broadcast %cst_31 : f32 to vector<1x16xf32>
    %84 = arith.divf %82, %83 : vector<1x16xf32>
    %cst_32 = arith.constant 9.99999974E-6 : f32
    %85 = vector.broadcast %cst_32 : f32 to vector<1x16xf32>
    %86 = arith.addf %84, %85 : vector<1x16xf32>
    %87 = math.rsqrt %86 : vector<1x16xf32>
    %88 = arith.mulf %72, %87 : vector<1x16xf32>
    %89 = vector.broadcast %88 : vector<1x16xf32> to vector<8x16xf32>
    %90 = arith.mulf %79, %89 : vector<8x16xf32>
    %91 = vector.broadcast %73 : vector<1x16xf32> to vector<8x16xf32>
    %92 = arith.addf %90, %91 : vector<8x16xf32>
    %cst_33 = arith.constant 0.000000e+00 : f32
    %93 = vector.broadcast %cst_33 : f32 to vector<8x16xf32>
    %94 = arith.maximumf %92, %93 : vector<8x16xf32>
    %95 = tpu.concatenate %94, %42 in 1 : vector<8x16xf32>, vector<8x8xf32> -> vector<8x24xf32>
    %c0_34 = arith.constant 0 : index
    %c0_35 = arith.constant 0 : index
    %96 = vector.load %arg6[%c0_34, %c0_35] : memref<8x24xf32, #tpu.memory_space<vmem>>, vector<8x24xf32>
    tpu.vector_store %arg6[%c0_34, %c0_35], %95 {strides = array<i32>} : memref<8x24xf32, #tpu.memory_space<vmem>>, vector<8x24xf32>,
    return
  }
}

</mosaic_0001>

<llo_original>
// kernel: forward.1
$region0: #{forward.1}
  #allocation0 [shape = 'u32[]', space=smem, size = 0x4, offset = 0x4, fixed_abs, tag = 'smem constant byte address 0x4 - core index']
  #allocation1 [shape = 'u32[72,128]{1,0:T(1,128)}', space=vmem, size = 0x9000, scoped, tag = 'internal scratch']
  %s0 = inlined_call_operand.vmem [shape: f32[8,16], index: 0, kind: input, shape index: {}]
  %s1 = inlined_call_operand.vmem [shape: f32[7,32], index: 1, kind: input, shape index: {}]
  %s2 = inlined_call_operand.vmem [shape: bf16[16,32], index: 2, kind: input, shape index: {}]
  %s3 = inlined_call_operand.vmem [shape: bf16[32,8], index: 3, kind: input, shape index: {}]
  %s4 = inlined_call_operand.vmem [shape: bf16[8,32], index: 4, kind: input, shape index: {}]
  %s5 = inlined_call_operand.vmem [shape: bf16[32,16], index: 5, kind: input, shape index: {}]
  %s6 = inlined_call_operand.vmem [shape: f32[8,24], index: 6, kind: output, shape index: {}]
  %s7 = sld [smem:[#allocation0]]
  $region34: #{forward.1} parent=0
    _
  %s9 = ssub.s32 1, %s7
  %s10 = scalar_select 0, %s9, %s7
  // Predicated region
  $region2: #{forward.1} parent=0 // pred_check
    _
  $region3: #{forward.1} parent=0 // pred_check_branch
    %12 = sbr.rel (0) target = $region5
  $region4: #{forward.1} parent=0 // pred_region
    _
  $region5: #{forward.1} parent=0 // pred_fallthru
    _
  // Predicated region
  $region6: #{forward.1} parent=0 // pred_check
    _
  $region7: #{forward.1} parent=0 // pred_check_branch
    %14 = sbr.rel (0) target = $region9
  $region8: #{forward.1} parent=0 // pred_region
    _
  $region9: #{forward.1} parent=0 // pred_fallthru
    _
  // Predicated region
  $region10: #{forward.1} parent=0 // pred_check
    _
  $region11: #{forward.1} parent=0 // pred_check_branch
    %16 = sbr.rel (0) target = $region13
  $region12: #{forward.1} parent=0 // pred_region
    _
  $region13: #{forward.1} parent=0 // pred_fallthru
    _
  // Predicated region
  $region14: #{forward.1} parent=0 // pred_check
    _
  $region15: #{forward.1} parent=0 // pred_check_branch
    %18 = sbr.rel (0) target = $region17
  $region16: #{forward.1} parent=0 // pred_region
    _
  $region17: #{forward.1} parent=0 // pred_fallthru
    _
  // Predicated region
  $region18: #{forward.1} parent=0 // pred_check
    _
  $region19: #{forward.1} parent=0 // pred_check_branch
    %20 = sbr.rel (0) target = $region21
  $region20: #{forward.1} parent=0 // pred_region
    _
  $region21: #{forward.1} parent=0 // pred_fallthru
    _
  // Predicated region
  $region22: #{forward.1} parent=0 // pred_check
    _
  $region23: #{forward.1} parent=0 // pred_check_branch
    %22 = sbr.rel (0) target = $region25
  $region24: #{forward.1} parent=0 // pred_region
    _
  $region25: #{forward.1} parent=0 // pred_fallthru
    _
  %v24 = vld [vmem:[%s1] sm:$0x7f]
  %v25 = vld [vmem:[%s0] sm:$0xff]
  %v26 = vld [vmem:[%s2] sm:$0xf]
  %v27 = vld [vmem:[%s2 + $0x4] sm:$0xf]
  %v28 = vpack.c.bf16 %v25, %v25
  %v31 = vunpack.c.l.b16 %v26
  %v32 = vunpack.c.l.b16 %v27
  %v33 = vpack.c.b16 %v32, %v31
  %vm35 = vcmask 130048
  %v37 = vsel %vm35, %v28, 0
  %39 = vmatpush.bf16.msra.mxu0 0
  %40 = vmatpush.bf16.msra.mxu0 0
  %41 = vmatpush.bf16.msra.mxu0 0
  %42 = vmatpush.bf16.msra.mxu0 0
  %43 = vmatpush.bf16.msra.mxu0 0
  %44 = vmatpush.bf16.msra.mxu0 0
  %45 = vmatpush.bf16.msra.mxu0 0
  %46 = vmatpush.bf16.msra.mxu0 %v33
  %47 = vmatmul.bf16.gmra.mxu0 %v37
  %v48 = vpop.f32.mrf.mxu0
  %v49 = vadd.f32 0.0, %v48
  %v50 = vpop.f32.mrf.mxu0
  %51 = vdwg.mxu0
  %vm52 = vcmask 261120
  %v53 = vsel %vm52, %v49, 0.0
  %v54 = vrot.slane %v53, 4
  %v55 = vadd.f32 %v53, %v54
  %v56 = vrot.slane %v55, 2
  %v57 = vadd.f32 %v55, %v56
  %v58 = vrot.slane %v57, 1
  %v59 = vadd.f32 %v57, %v58
  %v60 = vrcp.pop 8.0
  %v61 = vmul.f32 8.0, %v60
  %v62 = vsub.f32 1.0, %v61
  %v63 = vmul.f32 %v60, %v62
  %v64 = vadd.f32 %v60, %v63
  %vm65 = vweird.f32 %v60
  %v66 = vsel %vm65, %v60, %v64
  %v67 = vmul.f32 %v59, %v66
  %v68 = vsub.f32 %v49, %v67
  %v69 = vmul.f32 %v68, %v68
  %v70 = vsel %vm52, %v69, 0.0
  %v71 = vrot.slane %v70, 4
  %v72 = vadd.f32 %v70, %v71
  %v73 = vrot.slane %v72, 2
  %v74 = vadd.f32 %v72, %v73
  %v75 = vrot.slane %v74, 1
  %v76 = vadd.f32 %v74, %v75
  %v77 = vmul.f32 %v76, %v66
  %v78 = vadd.f32 %v77, 1e-05
  %v79 = vrsqrt.pop %v78
  %v80 = vmul.f32 %v79, %v78
  %v81 = vmul.f32 %v80, %v79
  %v82 = vmul.f32 0.5, %v81
  %v83 = vsub.f32 1.5, %v82
  %v84 = vmul.f32 %v79, %v83
  %vm85 = vweird.f32 %v78
  %vm86 = vweird.f32 %v79
  %vm87 = vmor %vm85, %vm86
  %v88 = vsel %vm87, %v79, %v84
  %v89 = vmul.f32 %v24, %v88
  %v90 = vperm.slane %v89, 0
  %v91 = vmul.f32 %v68, %v90
  %v92 = vperm.slane %v24, 1
  %v93 = vadd.f32 %v91, %v92
  %v94 = vmax.f32 %v93, 0.0
  %v95 = vld [vmem:[%s3] sm:$0xf]
  %v96 = vld [vmem:[%s3 + $0x4] sm:$0xf]
  %v97 = vld [vmem:[%s3 + $0x8] sm:$0xf]
  %v98 = vld [vmem:[%s3 + $0xc] sm:$0xf]
  %v99 = vpack.c.bf16 %v94, %v94
  %v100 = vperm.slane %v24, 2
  %v105 = vunpack.c.l.b16 %v95
  %v106 = vunpack.c.l.b16 %v96
  %v107 = vunpack.c.l.b16 %v97
  %v108 = vunpack.c.l.b16 %v98
  %v109 = vpack.c.b16 %v106, %v105
  %v110 = vpack.c.b16 %v108, %v107
  %v114 = vsel %vm52, %v99, 0
  %116 = vmatpush.bf16.msra.mxu0 0
  %117 = vmatpush.bf16.msra.mxu0 0
  %118 = vmatpush.bf16.msra.mxu0 0
  %119 = vmatpush.bf16.msra.mxu0 0
  %120 = vmatpush.bf16.msra.mxu0 0
  %121 = vmatpush.bf16.msra.mxu0 0
  %122 = vmatpush.bf16.msra.mxu0 %v110
  %123 = vmatpush.bf16.msra.mxu0 %v109
  %124 = vmatmul.bf16.gmra.mxu0 %v114
  %v125 = vpop.f32.mrf.mxu0
  %v126 = vadd.f32 %v100, %v125
  %v127 = vpop.f32.mrf.mxu0
  %128 = vdwg.mxu0
  %vm129 = vcmask 64512
  %v130 = vsel %vm129, %v126, -inf
  %131 = vmax.xlane.f32.xlu0 %v130
  %v132 = vpop.xlane.xlu0 %131
  %v133 = vsub.f32 %v126, %v132
  %v134 = vmul.f32 %v133, 1.442695
  %v135 = vpow.pop %v134
  %v136 = vsel %vm129, %v135, 0.0
  %137 = vadd.xlane.f32.xlu0 %v136
  %v138 = vpop.xlane.xlu0 %137
  %v139 = vrcp.pop %v138
  %v140 = vmul.f32 %v138, %v139
  %v141 = vsub.f32 1.0, %v140
  %v142 = vmul.f32 %v139, %v141
  %v143 = vadd.f32 %v139, %v142
  %vm144 = vweird.f32 %v138
  %vm145 = vweird.f32 %v139
  %vm146 = vmor %vm144, %vm145
  %v147 = vsel %vm146, %v139, %v143
  %v148 = vand.u32 2147483647, %v138
  %vm149 = vcmp.eq.f32.partialorder %v148, 8.507059e+37
  %v150 = vand.u32 %v138, 2147483648
  %v151 = vor.u32 1.1754944e-38, %v150
  %v152 = vsel %vm149, %v151, %v147
  %v153 = vmul.f32 %v135, %v152
  %v154 = vld [vmem:[%s4] sm:$0xf]
  %v155 = vpack.c.bf16 %v153, %v153
  %v157 = vsel %vm129, %v155, 0
  %vm159 = vcmask 1043456
  %v161 = vsel %vm159, %v154, 0
  %163 = vmatpush.bf16.msra.mxu0 0
  %164 = vmatpush.bf16.msra.mxu0 0
  %165 = vmatpush.bf16.msra.mxu0 0
  %166 = vmatpush.bf16.msra.mxu0 0
  %167 = vmatpush.bf16.msra.mxu0 0
  %168 = vmatpush.bf16.msra.mxu0 0
  %169 = vmatpush.bf16.msra.mxu0 0
  %170 = vmatpush.bf16.msra.mxu0 %v161
  %171 = vmatmul.bf16.gmra.mxu0 %v157
  %v172 = vpop.f32.mrf.mxu0
  %v173 = vadd.f32 0.0, %v172
  %v174 = vpop.f32.mrf.mxu0
  %175 = vdwg.mxu0
  %v176 = vsel %vm52, %v173, 0.0
  %v177 = vrot.slane %v176, 4
  %v178 = vadd.f32 %v176, %v177
  %v179 = vrot.slane %v178, 2
  %v180 = vadd.f32 %v178, %v179
  %v181 = vrot.slane %v180, 1
  %v182 = vadd.f32 %v180, %v181
  %v183 = vmul.f32 %v182, %v66
  %v184 = vsub.f32 %v173, %v183
  %v185 = vmul.f32 %v184, %v184
  %v186 = vsel %vm52, %v185, 0.0
  %v187 = vrot.slane %v186, 4
  %v188 = vadd.f32 %v186, %v187
  %v189 = vrot.slane %v188, 2
  %v190 = vadd.f32 %v188, %v189
  %v191 = vrot.slane %v190, 1
  %v192 = vadd.f32 %v190, %v191
  %v193 = vmul.f32 %v192, %v66
  %v194 = vadd.f32 %v193, 1e-05
  %v195 = vrsqrt.pop %v194
  %v196 = vmul.f32 %v195, %v194
  %v197 = vmul.f32 %v196, %v195
  %v198 = vmul.f32 0.5, %v197
  %v199 = vsub.f32 1.5, %v198
  %v200 = vmul.f32 %v195, %v199
  %vm201 = vweird.f32 %v194
  %vm202 = vweird.f32 %v195
  %vm203 = vmor %vm201, %vm202
  %v204 = vsel %vm203, %v195, %v200
  %v205 = vmul.f32 %v24, %v204
  %v206 = vperm.slane %v205, 3
  %v207 = vmul.f32 %v184, %v206
  %v208 = vperm.slane %v24, 4
  %v209 = vadd.f32 %v207, %v208
  %v210 = vmax.f32 %v209, 0.0
  %v211 = vld [vmem:[%s5] sm:$0xf]
  %v212 = vld [vmem:[%s5 + $0x4] sm:$0xf]
  %v213 = vld [vmem:[%s5 + $0x8] sm:$0xf]
  %v214 = vld [vmem:[%s5 + $0xc] sm:$0xf]
  %v215 = vpack.c.bf16 %v210, %v210
  %v220 = vunpack.c.l.b16 %v211
  %v221 = vunpack.c.l.b16 %v212
  %v222 = vunpack.c.l.b16 %v213
  %v223 = vunpack.c.l.b16 %v214
  %v224 = vpack.c.b16 %v221, %v220
  %v225 = vpack.c.b16 %v223, %v222
  %v229 = vsel %vm52, %v215, 0
  %231 = vmatpush.bf16.msra.mxu0 0
  %232 = vmatpush.bf16.msra.mxu0 0
  %233 = vmatpush.bf16.msra.mxu0 0
  %234 = vmatpush.bf16.msra.mxu0 0
  %235 = vmatpush.bf16.msra.mxu0 0
  %236 = vmatpush.bf16.msra.mxu0 0
  %237 = vmatpush.bf16.msra.mxu0 %v225
  %238 = vmatpush.bf16.msra.mxu0 %v224
  %239 = vmatmul.bf16.gmra.mxu0 %v229
  %v240 = vpop.f32.mrf.mxu0
  %v241 = vadd.f32 0.0, %v240
  %v242 = vpop.f32.mrf.mxu0
  %243 = vdwg.mxu0
  %v244 = vsel %vm35, %v241, 0.0
  %v245 = vrot.slane %v244, 4
  %v246 = vadd.f32 %v244, %v245
  %v247 = vrot.slane %v246, 2
  %v248 = vadd.f32 %v246, %v247
  %v249 = vrot.slane %v248, 1
  %v250 = vadd.f32 %v248, %v249
  %v251 = vmul.f32 %v250, %v66
  %v252 = vsub.f32 %v241, %v251
  %v253 = vmul.f32 %v252, %v252
  %v254 = vsel %vm35, %v253, 0.0
  %v255 = vrot.slane %v254, 4
  %v256 = vadd.f32 %v254, %v255
  %v257 = vrot.slane %v256, 2
  %v258 = vadd.f32 %v256, %v257
  %v259 = vrot.slane %v258, 1
  %v260 = vadd.f32 %v258, %v259
  %v261 = vmul.f32 %v260, %v66
  %v262 = vadd.f32 %v261, 1e-05
  %v263 = vrsqrt.pop %v262
  %v264 = vmul.f32 %v263, %v262
  %v265 = vmul.f32 %v264, %v263
  %v266 = vmul.f32 0.5, %v265
  %v267 = vsub.f32 1.5, %v266
  %v268 = vmul.f32 %v263, %v267
  %vm269 = vweird.f32 %v262
  %vm270 = vweird.f32 %v263
  %vm271 = vmor %vm269, %vm270
  %v272 = vsel %vm271, %v263, %v268
  %v273 = vmul.f32 %v24, %v272
  %v274 = vperm.slane %v273, 5
  %v275 = vmul.f32 %v252, %v274
  %v276 = vperm.slane %v24, 6
  %v277 = vadd.f32 %v275, %v276
  %v278 = vmax.f32 %v277, 0.0
  %280 = vrot.lane.b32.xlu0 %v153, 16
  %v281 = vpop.permute.xlu0 %280
  %v283 = vsel %vm35, %v278, %v281
  %vm284 = vcmask 195584
  %285 = vst.msk [vmem:[%s6] sm:$0xff] %vm284, %v283
  // Predicated region
  $region26: #{forward.1} parent=0 // pred_check
    _
  $region27: #{forward.1} parent=0 // pred_check_branch
    %287 = sbr.rel (0) target = $region29
  $region28: #{forward.1} parent=0 // pred_region
    _
  $region29: #{forward.1} parent=0 // pred_fallthru
    _
  // Predicated region
  $region30: #{forward.1} parent=0 // pred_check
    _
  $region31: #{forward.1} parent=0 // pred_check_branch
    %289 = sbr.rel (0) target = $region33
  $region32: #{forward.1} parent=0 // pred_region
    _
  $region33: #{forward.1} parent=0 // pred_fallthru
    _

</llo_original>
